<compile_context>
chip_gen: v7x
topology: tpu7x:2x2x1
jax: 0.10.0
libtpu: 0.0.40
codegen_flags: <defaults>
</compile_context>

<pallas_src>
import jax
import jax.numpy as jnp
import numpy as np
from jax.experimental import pallas as pl
from jax.experimental.pallas import tpu as pltpu


MATMUL_DTYPE = jnp.bfloat16  # MXU operand dtype; accumulation stays f32.
XW_DTYPE = jnp.bfloat16      # HBM dtype of the hoisted projection (1/2 traffic & VMEM).


# -----------------------------------------------------------------------------
# Pass 1: hoisted input projection  XW = x_flat @ W + bias  (one big matmul)
# -----------------------------------------------------------------------------
def _projection_kernel(x_ref, w_ref, b_ref, out_ref):
    acc = jnp.dot(x_ref[...], w_ref[...], preferred_element_type=jnp.float32)
    out_ref[...] = (acc + b_ref[...]).astype(out_ref.dtype)


def _project_inputs(x_tm, W, bias):
    """x_tm: (seq_len, batch, input) time-major -> (seq_len, batch, 4H) bf16."""
    seq_len, batch, input_size = x_tm.shape
    four_h = W.shape[1]
    M = seq_len * batch

    # Memory-bound matmul: large row tiles amortize the ~0.35us per-grid-step
    # overhead (512-row tiles measured ~85% of HBM roofline vs ~30% at 128).
    tm = 512 if M >= 512 else ((M + 7) // 8) * 8   # sublane-aligned tile
    n_tiles = pl.cdiv(M, tm)
    M_pad = n_tiles * tm

    x_flat = x_tm.reshape(M, input_size)
    if M_pad != M:
        x_flat = jnp.pad(x_flat, ((0, M_pad - M), (0, 0)))
    w = W.astype(MATMUL_DTYPE)
    b2d = bias.reshape(1, four_h).astype(jnp.float32)

    xw = pl.pallas_call(
        _projection_kernel,
        out_shape=jax.ShapeDtypeStruct((M_pad, four_h), XW_DTYPE),
        grid_spec=pltpu.PrefetchScalarGridSpec(
            num_scalar_prefetch=0,
            grid=(n_tiles,),
            in_specs=[
                pl.BlockSpec((tm, input_size), lambda i: (i, 0)),
                pl.BlockSpec((input_size, four_h), lambda i: (0, 0)),
                pl.BlockSpec((1, four_h), lambda i: (0, 0)),
            ],
            out_specs=pl.BlockSpec((tm, four_h), lambda i: (i, 0)),
        ),
        compiler_params=pltpu.CompilerParams(
            dimension_semantics=("parallel",),
        ),
    )(x_flat, w, b2d)
    if M_pad != M:
        xw = xw[:M]
    return xw.reshape(seq_len, batch, four_h)


# -----------------------------------------------------------------------------
# Pass 2: serial recurrence, time loop in-kernel, seq axis chunked on the grid
# -----------------------------------------------------------------------------
def _make_recurrent_kernel(hidden_size: int, seq_chunk: int, seq_len: int,
                           unroll: int):
    H = hidden_size
    inv_T = 1.0 / float(seq_len)

    def kernel(xw_ref, u_ref, out_ref, h_ref, c_ref, hsum_ref):
        # xw_ref : (seq_chunk, tb, 4H) bf16 -- time-major chunk of x@W + bias
        # u_ref  : (H, 4H)             bf16 -- recurrent weights (VMEM-resident)
        # h/c/hsum scratch: (tb, H) f32, carried across the seq-chunk grid axis.
        s = pl.program_id(1)

        @pl.when(s == 0)
        def _init():
            h_ref[...] = jnp.zeros_like(h_ref)
            c_ref[...] = jnp.zeros_like(c_ref)
            hsum_ref[...] = jnp.zeros_like(hsum_ref)

        u = u_ref[...]

        def step(t, carry):
            h, c, hsum = carry
            # Only the recurrent matmul sits on the serial dependency chain.
            gates = xw_ref[t].astype(jnp.float32) + jnp.dot(
                h.astype(MATMUL_DTYPE), u, preferred_element_type=jnp.float32)
            # Gate order matches the homework module: [f, i, g, o].
            # f and i are adjacent lanes -> one fused sigmoid launch.
            fi = jax.nn.sigmoid(gates[:, :2 * H])
            f_t = fi[:, :H]
            i_t = fi[:, H:]
            g_t = jnp.tanh(gates[:, 2 * H:3 * H])
            o_t = jax.nn.sigmoid(gates[:, 3 * H:])
            c_new = f_t * c + i_t * g_t
            h_new = o_t * jnp.tanh(c_new)
            return h_new, c_new, hsum + h_new

        h, c, hsum = jax.lax.fori_loop(
            0, seq_chunk, step, (h_ref[...], c_ref[...], hsum_ref[...]),
            unroll=unroll)
        h_ref[...] = h
        c_ref[...] = c
        hsum_ref[...] = hsum
        # Same output block across the seq-chunk axis; the last chunk's value
        # is what lands in HBM.
        out_ref[...] = (hsum * inv_T).astype(out_ref.dtype)

    return kernel


def _choose_batch_tile(batch: int) -> int:
    # tb is the M dim of the only matmul on the serial critical path, so keep
    # it as large as possible (tb = batch on single-TC v5e/v6e).  Split into
    # two "parallel" tiles (one per TensorCore on megacore parts, e.g. v7x)
    # only when each half still keeps the MXU row dim well fed (>= 64 rows)
    # and stays sublane-aligned.  Never split a small batch.
    half = batch // 2
    if batch % 2 == 0 and half >= 64 and half % 8 == 0:
        return half
    return batch


def _choose_seq_chunk(seq_len: int) -> int:
    # Cap the per-tile XW slab (and its double buffer) so VMEM stays bounded
    # for long sequences while BlockSpec pipelining overlaps chunk DMA with
    # the recurrence.
    if seq_len <= 128:
        return seq_len
    for c in (128, 64, 32, 16, 8):
        if seq_len % c == 0:
            return c
    # TODO(synk): pad/mask the time axis for very long sequences whose length
    # has no small divisor; for now fall back to a single whole-sequence chunk.
    return seq_len


def lstm_forward(x, W, U, bias):
    """x: (batch, seq_len, input_size); returns (batch, hidden_size) = mean_t h_t."""
    batch, seq_len, input_size = x.shape
    hidden_size = U.shape[0]
    four_h = 4 * hidden_size
    assert W.shape == (input_size, four_h)
    assert U.shape == (hidden_size, four_h)
    assert bias.shape == (four_h,)

    # Pass 1: time-major layout + hoisted input projection (bias folded in).
    # The transpose is one XLA copy of the *smallest* tensor (x, in bf16);
    # folding it into the Pass-1 BlockSpecs would require an in-kernel
    # leading-dim transpose, which we avoid for lowering robustness.
    x_tm = jnp.transpose(x.astype(MATMUL_DTYPE), (1, 0, 2))
    xw = _project_inputs(x_tm, W, bias)  # (seq_len, batch, 4H) bf16

    tb = _choose_batch_tile(batch)
    seq_chunk = _choose_seq_chunk(seq_len)
    n_batch_tiles = batch // tb
    n_seq_chunks = seq_len // seq_chunk

    # Scoped-VMEM budget: double-buffered XW chunk + resident U + out block +
    # state scratch.  v5e's scoped default is only 16 MiB; cap at 64 MiB so we
    # never exceed v7x physical VMEM.
    need = (2 * seq_chunk * tb * four_h * 2      # XW chunk, double-buffered, bf16
            + 2 * hidden_size * four_h * 2       # U, bf16
            + 2 * tb * hidden_size * 4           # output block, f32
            + 3 * tb * hidden_size * 4)          # h / c / hsum scratch, f32
    vmem_limit = int(min(max(2 * need, 32 * 2**20), 64 * 2**20))

    kernel = _make_recurrent_kernel(hidden_size, seq_chunk, seq_len, unroll=4)

    out = pl.pallas_call(
        kernel,
        out_shape=jax.ShapeDtypeStruct((batch, hidden_size), jnp.float32),
        grid_spec=pltpu.PrefetchScalarGridSpec(
            num_scalar_prefetch=0,
            grid=(n_batch_tiles, n_seq_chunks),
            in_specs=[
                pl.BlockSpec((seq_chunk, tb, four_h), lambda b, s: (s, b, 0)),
                pl.BlockSpec((hidden_size, four_h), lambda b, s: (0, 0)),
            ],
            out_specs=pl.BlockSpec((tb, hidden_size), lambda b, s: (b, 0)),
            scratch_shapes=[
                pltpu.VMEM((tb, hidden_size), jnp.float32),   # h
                pltpu.VMEM((tb, hidden_size), jnp.float32),   # c
                pltpu.VMEM((tb, hidden_size), jnp.float32),   # h_sum
            ],
        ),
        compiler_params=pltpu.CompilerParams(
            dimension_semantics=("parallel", "arbitrary"),
            vmem_limit_bytes=vmem_limit,
        ),
    )(xw, U.astype(MATMUL_DTYPE))
    return out


# -----------------------------------------------------------------------------
# Pure-JAX reference mirroring the PyTorch forward with the kernel's precision
# choices (bf16 MXU operands, bf16-rounded x@W+bias, f32 gate/state math).
# -----------------------------------------------------------------------------
def lstm_reference(x, W, U, bias):
    batch, seq_len, _ = x.shape
    H = U.shape[0]
    w = W.astype(MATMUL_DTYPE)
    u = U.astype(MATMUL_DTYPE)
    h = jnp.zeros((batch, H), jnp.float32)
    c = jnp.zeros((batch, H), jnp.float32)
    hs = jnp.zeros((batch, H), jnp.float32)
    for t in range(seq_len):
        x_t = x[:, t, :].astype(MATMUL_DTYPE)
        xw_t = (jnp.dot(x_t, w, preferred_element_type=jnp.float32)
                + bias.astype(jnp.float32)).astype(XW_DTYPE).astype(jnp.float32)
        g = xw_t + jnp.dot(h.astype(MATMUL_DTYPE), u,
                           preferred_element_type=jnp.float32)
        f_t = jax.nn.sigmoid(g[:, :H])
        i_t = jax.nn.sigmoid(g[:, H:2 * H])
        g_t = jnp.tanh(g[:, 2 * H:3 * H])
        o_t = jax.nn.sigmoid(g[:, 3 * H:])
        c = f_t * c + i_t * g_t
        h = o_t * jnp.tanh(c)
        hs = hs + h
    return hs / seq_len


if __name__ == "__main__":
    # Small shapes consistent with the module; hidden is a multiple of 128 so
    # gate slices / output stores are lane-dense; batch=16 -> one full batch
    # tile (tb=16 satisfies bf16 (16,128) sublane packing).
    batch, seq_len, input_size, hidden_size = 16, 16, 64, 128

    key = jax.random.PRNGKey(0)
    kx, kw, ku, kb = jax.random.split(key, 4)

    boundary = 1.0 / np.sqrt(hidden_size)
    x = jax.random.normal(kx, (batch, seq_len, input_size), jnp.float32)
    W = jax.random.uniform(kw, (input_size, 4 * hidden_size), jnp.float32,
                           -boundary, boundary)
    U = jax.random.uniform(ku, (hidden_size, 4 * hidden_size), jnp.float32,
                           -boundary, boundary)
    bias = jax.random.uniform(kb, (4 * hidden_size,), jnp.float32,
                              -boundary, boundary)

    out = jax.block_until_ready(lstm_forward(x, W, U, bias))
    ref = jax.block_until_ready(lstm_reference(x, W, U, bias))

    np.testing.assert_allclose(np.asarray(out), np.asarray(ref),
                               atol=2e-3, rtol=2e-3)
    print("KERNEL_OK")
</pallas_src>

<mosaic_0001>
module attributes {stable_mosaic.version = 11 : i64} {
  func.func @_projection_kernel(%arg0: i32, %arg1: memref<256x64xbf16, #tpu.memory_space<vmem>>, %arg2: memref<64x512xbf16, #tpu.memory_space<vmem>>, %arg3: memref<1x512xf32, #tpu.memory_space<vmem>>, %arg4: memref<256x512xbf16, #tpu.memory_space<vmem>>) attributes {dimension_semantics = [#tpu.dimension_semantics<parallel>], iteration_bounds = array<i64: 1>, scalar_prefetch = 0 : i64, scratch_operands = 0 : i64, tpu.core_type = #tpu.core_type<tc>, window_params = [{transform_indices = @transform_0, window_bounds = array<i64: 256, 64>}, {pipeline_mode = #tpu.pipeline_mode<synchronous>, transform_indices = @transform_1, window_bounds = array<i64: 64, 512>}, {pipeline_mode = #tpu.pipeline_mode<synchronous>, transform_indices = @transform_2, window_bounds = array<i64: 1, 512>}, {transform_indices = @transform_3, window_bounds = array<i64: 256, 512>}]} {
    %c0 = arith.constant 0 : index
    %c0_0 = arith.constant 0 : index
    %0 = vector.load %arg1[%c0, %c0_0] : memref<256x64xbf16, #tpu.memory_space<vmem>>, vector<256x64xbf16>
    %c0_1 = arith.constant 0 : index
    %c0_2 = arith.constant 0 : index
    %1 = vector.load %arg2[%c0_1, %c0_2] : memref<64x512xbf16, #tpu.memory_space<vmem>>, vector<64x512xbf16>
    %cst = arith.constant dense<0.000000e+00> : vector<256x512xf32>
    %2 = tpu.matmul %0, %1, %cst {dimension_numbers = #tpu.dot_dimension_numbers<[1], [0], [0], [1], [0, 0, 1, 1], [], []>} : vector<256x64xbf16>, vector<64x512xbf16>, vector<256x512xf32> -> vector<256x512xf32>
    %c0_3 = arith.constant 0 : index
    %c0_4 = arith.constant 0 : index
    %3 = vector.load %arg3[%c0_3, %c0_4] : memref<1x512xf32, #tpu.memory_space<vmem>>, vector<1x512xf32>
    %4 = vector.broadcast %3 : vector<1x512xf32> to vector<256x512xf32>
    %5 = arith.addf %2, %4 : vector<256x512xf32>
    %6 = arith.truncf %5 : vector<256x512xf32> to vector<256x512xbf16>
    %c0_5 = arith.constant 0 : index
    %c0_6 = arith.constant 0 : index
    %7 = vector.load %arg4[%c0_5, %c0_6] : memref<256x512xbf16, #tpu.memory_space<vmem>>, vector<256x512xbf16>
    tpu.vector_store %arg4[%c0_5, %c0_6], %6 {strides = array<i32>} : memref<256x512xbf16, #tpu.memory_space<vmem>>, vector<256x512xbf16>,
    return
  }
  func.func @transform_0(%arg0: i32) -> (i32, i32) {
    %c0_i32 = arith.constant 0 : i32
    %c0_i32_0 = arith.constant 0 : i32
    return %arg0, %c0_i32 : i32, i32
  }
  func.func @transform_1(%arg0: i32) -> (i32, i32) {
    %c0_i32 = arith.constant 0 : i32
    %c0_i32_0 = arith.constant 0 : i32
    %c0_i32_1 = arith.constant 0 : i32
    return %c0_i32, %c0_i32_0 : i32, i32
  }
  func.func @transform_2(%arg0: i32) -> (i32, i32) {
    %c0_i32 = arith.constant 0 : i32
    %c0_i32_0 = arith.constant 0 : i32
    %c0_i32_1 = arith.constant 0 : i32
    return %c0_i32, %c0_i32_0 : i32, i32
  }
  func.func @transform_3(%arg0: i32) -> (i32, i32) {
    %c0_i32 = arith.constant 0 : i32
    %c0_i32_0 = arith.constant 0 : i32
    return %arg0, %c0_i32 : i32, i32
  }
}

</mosaic_0001>

<llo_original>
// kernel: tpu_custom_call.1
$region0: #{tpu_custom_call.1}
  #allocation0 [shape = 'u32[]', space=smem, size = 0x4, offset = 0x4, fixed_abs, tag = 'smem constant byte address 0x4 - core index']
  #allocation1 [shape = 'u32[144,128]{1,0:T(1,128)}', space=vmem, size = 0x12000, scoped, tag = 'internal scratch']
  %s0 = inlined_call_operand.vmem [shape: bf16[256,64], index: 0, kind: input, shape index: {}]
  %s1 = inlined_call_operand.vmem [shape: bf16[64,512], index: 1, kind: input, shape index: {}]
  %s2 = inlined_call_operand.vmem [shape: f32[1,512], index: 2, kind: input, shape index: {}]
  %s3 = inlined_call_operand.hbm [shape: bf16[256,512], index: 3, kind: output, shape index: {}]
  %s4 = sld [smem:[#allocation0]]
  $region22: #{tpu_custom_call.1} parent=0
    _
  %s6 = ssub.s32 1, %s4
  %s7 = scalar_select 0, %s6, %s4
  $region1: #{tpu_custom_call.1} parent=0
    #allocation2 [shape = 'u8[262144]{0}', space=vmem, size = 0x40000, scoped, tag = 'output window, operand 0, single buffered']
    #allocation3 [shape = 's32[1]{0}', space=sflag, size = 0x4, scoped, tag = 'scoped memory for tpu_custom_call.1']
    %8 = vsyncpa [#allocation3], 0
    // Predicated region
    $region2: #{tpu_custom_call.1} parent=1 // pred_check
      _
    $region3: #{tpu_custom_call.1} parent=1 // pred_check_branch
      %10 = sbr.rel (0) target = $region5
    $region4: #{tpu_custom_call.1} parent=1 // pred_region
      _
    $region5: #{tpu_custom_call.1} parent=1 // pred_fallthru
      _
    // Predicated region
    $region6: #{tpu_custom_call.1} parent=1 // pred_check
      _
    $region7: #{tpu_custom_call.1} parent=1 // pred_check_branch
      %12 = sbr.rel (0) target = $region9
    $region8: #{tpu_custom_call.1} parent=1 // pred_region
      _
    $region9: #{tpu_custom_call.1} parent=1 // pred_fallthru
      _
    // Predicated region
    $region10: #{tpu_custom_call.1} parent=1 // pred_check
      _
    $region11: #{tpu_custom_call.1} parent=1 // pred_check_branch
      %14 = sbr.rel (0) target = $region13
    $region12: #{tpu_custom_call.1} parent=1 // pred_region
      _
    $region13: #{tpu_custom_call.1} parent=1 // pred_fallthru
      _
    %v16 = vld [vmem:[%s0] sm:$0xf]
    %v17 = vld [vmem:[%s0 + $0x4] sm:$0xf]
    %v18 = vld [vmem:[%s0 + $0x8] sm:$0xf]
    %v19 = vld [vmem:[%s0 + $0xc] sm:$0xf]
    %v20 = vld [vmem:[%s0 + $0x10] sm:$0xf]
    %v21 = vld [vmem:[%s0 + $0x14] sm:$0xf]
    %v22 = vld [vmem:[%s0 + $0x18] sm:$0xf]
    %v23 = vld [vmem:[%s0 + $0x1c] sm:$0xf]
    %v24 = vld [vmem:[%s0 + $0x20] sm:$0xf]
    %v25 = vld [vmem:[%s0 + $0x24] sm:$0xf]
    %v26 = vld [vmem:[%s0 + $0x28] sm:$0xf]
    %v27 = vld [vmem:[%s0 + $0x2c] sm:$0xf]
    %v28 = vld [vmem:[%s0 + $0x30] sm:$0xf]
    %v29 = vld [vmem:[%s0 + $0x34] sm:$0xf]
    %v30 = vld [vmem:[%s0 + $0x38] sm:$0xf]
    %v31 = vld [vmem:[%s0 + $0x3c] sm:$0xf]
    %v32 = vld [vmem:[%s0 + $0x40] sm:$0xf]
    %v33 = vld [vmem:[%s0 + $0x44] sm:$0xf]
    %v34 = vld [vmem:[%s0 + $0x48] sm:$0xf]
    %v35 = vld [vmem:[%s0 + $0x4c] sm:$0xf]
    %v36 = vld [vmem:[%s0 + $0x50] sm:$0xf]
    %v37 = vld [vmem:[%s0 + $0x54] sm:$0xf]
    %v38 = vld [vmem:[%s0 + $0x58] sm:$0xf]
    %v39 = vld [vmem:[%s0 + $0x5c] sm:$0xf]
    %v40 = vld [vmem:[%s0 + $0x60] sm:$0xf]
    %v41 = vld [vmem:[%s0 + $0x64] sm:$0xf]
    %v42 = vld [vmem:[%s0 + $0x68] sm:$0xf]
    %v43 = vld [vmem:[%s0 + $0x6c] sm:$0xf]
    %v44 = vld [vmem:[%s0 + $0x70] sm:$0xf]
    %v45 = vld [vmem:[%s0 + $0x74] sm:$0xf]
    %v46 = vld [vmem:[%s0 + $0x78] sm:$0xf]
    %v47 = vld [vmem:[%s0 + $0x7c] sm:$0xf]
    %v48 = vld [vmem:[%s1] sm:$0xff]
    %v49 = vld [vmem:[%s1 + $0x8] sm:$0xff]
    %v50 = vld [vmem:[%s1 + $0x10] sm:$0xff]
    %v51 = vld [vmem:[%s1 + $0x18] sm:$0xff]
    %v52 = vld [vmem:[%s1 + $0x20] sm:$0xff]
    %v53 = vld [vmem:[%s1 + $0x28] sm:$0xff]
    %v54 = vld [vmem:[%s1 + $0x30] sm:$0xff]
    %v55 = vld [vmem:[%s1 + $0x38] sm:$0xff]
    %v56 = vld [vmem:[%s1 + $0x40] sm:$0xff]
    %v57 = vld [vmem:[%s1 + $0x48] sm:$0xff]
    %v58 = vld [vmem:[%s1 + $0x50] sm:$0xff]
    %v59 = vld [vmem:[%s1 + $0x58] sm:$0xff]
    %v60 = vld [vmem:[%s1 + $0x60] sm:$0xff]
    %v61 = vld [vmem:[%s1 + $0x68] sm:$0xff]
    %v62 = vld [vmem:[%s1 + $0x70] sm:$0xff]
    %v63 = vld [vmem:[%s1 + $0x78] sm:$0xff]
    %v64 = vld [vmem:[%s2] sm:$0xf]
    %v66 = vlaneseq
    %v67 = vshrl.u32 %v66, 7
    %v68 = vsub.s32 0, %v67
    %v69 = vrot.slane %v64, %v68
    %v70 = vlaneseq
    %v71 = vshrl.u32 %v70, 7
    %v72 = vsub.s32 1, %v71
    %v73 = vrot.slane %v64, %v72
    %v74 = vlaneseq
    %v75 = vshrl.u32 %v74, 7
    %v76 = vsub.s32 2, %v75
    %v77 = vrot.slane %v64, %v76
    %v78 = vlaneseq
    %v79 = vshrl.u32 %v78, 7
    %v80 = vsub.s32 3, %v79
    %v81 = vrot.slane %v64, %v80
    %v118 = vunpack.c.l.b16 %v16
    %v119 = vunpack.c.l.b16 %v17
    %v120 = vunpack.c.l.b16 %v18
    %v121 = vunpack.c.l.b16 %v19
    %v122 = vunpack.c.l.b16 %v20
    %v123 = vunpack.c.l.b16 %v21
    %v124 = vunpack.c.l.b16 %v22
    %v125 = vunpack.c.l.b16 %v23
    %v126 = vunpack.c.l.b16 %v24
    %v127 = vunpack.c.l.b16 %v25
    %v128 = vunpack.c.l.b16 %v26
    %v129 = vunpack.c.l.b16 %v27
    %v130 = vunpack.c.l.b16 %v28
    %v131 = vunpack.c.l.b16 %v29
    %v132 = vunpack.c.l.b16 %v30
    %v133 = vunpack.c.l.b16 %v31
    %v134 = vunpack.c.l.b16 %v32
    %v135 = vunpack.c.l.b16 %v33
    %v136 = vunpack.c.l.b16 %v34
    %v137 = vunpack.c.l.b16 %v35
    %v138 = vunpack.c.l.b16 %v36
    %v139 = vunpack.c.l.b16 %v37
    %v140 = vunpack.c.l.b16 %v38
    %v141 = vunpack.c.l.b16 %v39
    %v142 = vunpack.c.l.b16 %v40
    %v143 = vunpack.c.l.b16 %v41
    %v144 = vunpack.c.l.b16 %v42
    %v145 = vunpack.c.l.b16 %v43
    %v146 = vunpack.c.l.b16 %v44
    %v147 = vunpack.c.l.b16 %v45
    %v148 = vunpack.c.l.b16 %v46
    %v149 = vunpack.c.l.b16 %v47
    %v150 = vpack.c.b16 %v119, %v118
    %v151 = vpack.c.b16 %v121, %v120
    %v152 = vpack.c.b16 %v123, %v122
    %v153 = vpack.c.b16 %v125, %v124
    %v154 = vpack.c.b16 %v127, %v126
    %v155 = vpack.c.b16 %v129, %v128
    %v156 = vpack.c.b16 %v131, %v130
    %v157 = vpack.c.b16 %v133, %v132
    %v158 = vpack.c.b16 %v135, %v134
    %v159 = vpack.c.b16 %v137, %v136
    %v160 = vpack.c.b16 %v139, %v138
    %v161 = vpack.c.b16 %v141, %v140
    %v162 = vpack.c.b16 %v143, %v142
    %v163 = vpack.c.b16 %v145, %v144
    %v164 = vpack.c.b16 %v147, %v146
    %v165 = vpack.c.b16 %v149, %v148
    %v182 = vunpack.c.l.b16 %v48
    %v183 = vunpack.c.h.b16 %v48
    %v184 = vunpack.c.l.b16 %v49
    %v185 = vunpack.c.h.b16 %v49
    %v186 = vunpack.c.l.b16 %v50
    %v187 = vunpack.c.h.b16 %v50
    %v188 = vunpack.c.l.b16 %v51
    %v189 = vunpack.c.h.b16 %v51
    %v190 = vunpack.c.l.b16 %v52
    %v191 = vunpack.c.h.b16 %v52
    %v192 = vunpack.c.l.b16 %v53
    %v193 = vunpack.c.h.b16 %v53
    %v194 = vunpack.c.l.b16 %v54
    %v195 = vunpack.c.h.b16 %v54
    %v196 = vunpack.c.l.b16 %v55
    %v197 = vunpack.c.h.b16 %v55
    %v198 = vunpack.c.l.b16 %v56
    %v199 = vunpack.c.h.b16 %v56
    %v200 = vunpack.c.l.b16 %v57
    %v201 = vunpack.c.h.b16 %v57
    %v202 = vunpack.c.l.b16 %v58
    %v203 = vunpack.c.h.b16 %v58
    %v204 = vunpack.c.l.b16 %v59
    %v205 = vunpack.c.h.b16 %v59
    %v206 = vunpack.c.l.b16 %v60
    %v207 = vunpack.c.h.b16 %v60
    %v208 = vunpack.c.l.b16 %v61
    %v209 = vunpack.c.h.b16 %v61
    %v210 = vunpack.c.l.b16 %v62
    %v211 = vunpack.c.h.b16 %v62
    %v212 = vunpack.c.l.b16 %v63
    %v213 = vunpack.c.h.b16 %v63
    %v214 = vpack.c.b16 %v186, %v182
    %v215 = vpack.c.b16 %v187, %v183
    %v216 = vpack.c.b16 %v188, %v184
    %v217 = vpack.c.b16 %v189, %v185
    %v218 = vpack.c.b16 %v194, %v190
    %v219 = vpack.c.b16 %v195, %v191
    %v220 = vpack.c.b16 %v196, %v192
    %v221 = vpack.c.b16 %v197, %v193
    %v222 = vpack.c.b16 %v202, %v198
    %v223 = vpack.c.b16 %v203, %v199
    %v224 = vpack.c.b16 %v204, %v200
    %v225 = vpack.c.b16 %v205, %v201
    %v226 = vpack.c.b16 %v210, %v206
    %v227 = vpack.c.b16 %v211, %v207
    %v228 = vpack.c.b16 %v212, %v208
    %v229 = vpack.c.b16 %v213, %v209
    %vm246 = vcmask 523264
    %v248 = vsel %vm246, %v150, 0
    %v251 = vsel %vm246, %v151, 0
    %v254 = vsel %vm246, %v152, 0
    %v257 = vsel %vm246, %v153, 0
    %v260 = vsel %vm246, %v154, 0
    %v263 = vsel %vm246, %v155, 0
    %v266 = vsel %vm246, %v156, 0
    %v269 = vsel %vm246, %v157, 0
    %v272 = vsel %vm246, %v158, 0
    %v275 = vsel %vm246, %v159, 0
    %v278 = vsel %vm246, %v160, 0
    %v281 = vsel %vm246, %v161, 0
    %v284 = vsel %vm246, %v162, 0
    %v287 = vsel %vm246, %v163, 0
    %v290 = vsel %vm246, %v164, 0
    %v293 = vsel %vm246, %v165, 0
    %295 = vmatprep.subr.bf16.mxu0 %v215
    %296 = vmatpush1.bf16.msra.mxu0 %v214
    %297 = vmatprep.subr.bf16.mxu0 %v219
    %298 = vmatpush1.bf16.msra.mxu0 %v218
    %299 = vmatprep.subr.bf16.mxu0 %v223
    %300 = vmatpush1.bf16.msra.mxu0 %v222
    %301 = vmatprep.subr.bf16.mxu0 %v227
    %302 = vmatpush1.bf16.msra.mxu0 %v226
    %303 = vmatprep.subr.bf16.mxu0 0
    %304 = vmatpush1.bf16.msra.mxu0 0
    %305 = vmatprep.subr.bf16.mxu0 0
    %306 = vmatpush1.bf16.msra.mxu0 0
    %307 = vmatprep.subr.bf16.mxu0 0
    %308 = vmatpush1.bf16.msra.mxu0 0
    %309 = vmatprep.subr.bf16.mxu0 0
    %310 = vmatpush1.bf16.msra.mxu0 0
    %311 = vmatprep.subr.bf16.mxu0 0
    %312 = vmatpush1.bf16.msra.mxu0 0
    %313 = vmatprep.subr.bf16.mxu0 0
    %314 = vmatpush1.bf16.msra.mxu0 0
    %315 = vmatprep.subr.bf16.mxu0 0
    %316 = vmatpush1.bf16.msra.mxu0 0
    %317 = vmatprep.subr.bf16.mxu0 0
    %318 = vmatpush1.bf16.msra.mxu0 0
    %319 = vmatprep.subr.bf16.mxu0 0
    %320 = vmatpush1.bf16.msra.mxu0 0
    %321 = vmatprep.subr.bf16.mxu0 0
    %322 = vmatpush1.bf16.msra.mxu0 0
    %323 = vmatprep.subr.bf16.mxu0 0
    %324 = vmatpush1.bf16.msra.mxu0 0
    %325 = vmatprep.subr.bf16.mxu0 0
    %326 = vmatpush1.bf16.msra.mxu0 0
    %327 = vmatprep.mubr.bf16.mxu0 0
    %328 = vmatmul.mubr.bf16.gmra.mrb[0].mxu0 %v248
    %v329 = vpop.f32.mrb[0].mxu0
    %v330 = vadd.f32 %v69, %v329
    %v331 = vpop.f32.mrb[0].mxu0
    %v332 = vadd.f32 %v73, %v331
    %v333 = vpop.f32.mrb[0].mxu0
    %v334 = vadd.f32 %v69, %v333
    %v335 = vpop.f32.mrb[0].mxu0
    %v336 = vadd.f32 %v73, %v335
    %337 = vmatprep.mubr.bf16.mxu0 0
    %338 = vmatmul.mubr.bf16.gmra.mrb[0].mxu0 %v251
    %v339 = vpop.f32.mrb[0].mxu0
    %v340 = vadd.f32 %v69, %v339
    %v341 = vpop.f32.mrb[0].mxu0
    %v342 = vadd.f32 %v73, %v341
    %v343 = vpop.f32.mrb[0].mxu0
    %v344 = vadd.f32 %v69, %v343
    %v345 = vpop.f32.mrb[0].mxu0
    %v346 = vadd.f32 %v73, %v345
    %347 = vmatprep.mubr.bf16.mxu0 0
    %348 = vmatmul.mubr.bf16.gmra.mrb[0].mxu0 %v254
    %v349 = vpop.f32.mrb[0].mxu0
    %v350 = vadd.f32 %v69, %v349
    %v351 = vpop.f32.mrb[0].mxu0
    %v352 = vadd.f32 %v73, %v351
    %v353 = vpop.f32.mrb[0].mxu0
    %v354 = vadd.f32 %v69, %v353
    %v355 = vpop.f32.mrb[0].mxu0
    %v356 = vadd.f32 %v73, %v355
    %357 = vmatprep.mubr.bf16.mxu0 0
    %358 = vmatmul.mubr.bf16.gmra.mrb[0].mxu0 %v257
    %v359 = vpop.f32.mrb[0].mxu0
    %v360 = vadd.f32 %v69, %v359
    %v361 = vpop.f32.mrb[0].mxu0
    %v362 = vadd.f32 %v73, %v361
    %v363 = vpop.f32.mrb[0].mxu0
    %v364 = vadd.f32 %v69, %v363
    %v365 = vpop.f32.mrb[0].mxu0
    %v366 = vadd.f32 %v73, %v365
    %367 = vmatprep.mubr.bf16.mxu0 0
    %368 = vmatmul.mubr.bf16.gmra.mrb[0].mxu0 %v260
    %v369 = vpop.f32.mrb[0].mxu0
    %v370 = vadd.f32 %v69, %v369
    %v371 = vpop.f32.mrb[0].mxu0
    %v372 = vadd.f32 %v73, %v371
    %v373 = vpop.f32.mrb[0].mxu0
    %v374 = vadd.f32 %v69, %v373
    %v375 = vpop.f32.mrb[0].mxu0
    %v376 = vadd.f32 %v73, %v375
    %377 = vmatprep.mubr.bf16.mxu0 0
    %378 = vmatmul.mubr.bf16.gmra.mrb[0].mxu0 %v263
    %v379 = vpop.f32.mrb[0].mxu0
    %v380 = vadd.f32 %v69, %v379
    %v381 = vpop.f32.mrb[0].mxu0
    %v382 = vadd.f32 %v73, %v381
    %v383 = vpop.f32.mrb[0].mxu0
    %v384 = vadd.f32 %v69, %v383
    %v385 = vpop.f32.mrb[0].mxu0
    %v386 = vadd.f32 %v73, %v385
    %387 = vmatprep.mubr.bf16.mxu0 0
    %388 = vmatmul.mubr.bf16.gmra.mrb[0].mxu0 %v266
    %v389 = vpop.f32.mrb[0].mxu0
    %v390 = vadd.f32 %v69, %v389
    %v391 = vpop.f32.mrb[0].mxu0
    %v392 = vadd.f32 %v73, %v391
    %v393 = vpop.f32.mrb[0].mxu0
    %v394 = vadd.f32 %v69, %v393
    %v395 = vpop.f32.mrb[0].mxu0
    %v396 = vadd.f32 %v73, %v395
    %397 = vmatprep.mubr.bf16.mxu0 0
    %398 = vmatmul.mubr.bf16.gmra.mrb[0].mxu0 %v269
    %v399 = vpop.f32.mrb[0].mxu0
    %v400 = vadd.f32 %v69, %v399
    %v401 = vpop.f32.mrb[0].mxu0
    %v402 = vadd.f32 %v73, %v401
    %v403 = vpop.f32.mrb[0].mxu0
    %v404 = vadd.f32 %v69, %v403
    %v405 = vpop.f32.mrb[0].mxu0
    %v406 = vadd.f32 %v73, %v405
    %407 = vmatprep.mubr.bf16.mxu0 0
    %408 = vmatmul.mubr.bf16.gmra.mrb[0].mxu0 %v272
    %v409 = vpop.f32.mrb[0].mxu0
    %v410 = vadd.f32 %v69, %v409
    %v411 = vpop.f32.mrb[0].mxu0
    %v412 = vadd.f32 %v73, %v411
    %v413 = vpop.f32.mrb[0].mxu0
    %v414 = vadd.f32 %v69, %v413
    %v415 = vpop.f32.mrb[0].mxu0
    %v416 = vadd.f32 %v73, %v415
    %417 = vmatprep.mubr.bf16.mxu0 0
    %418 = vmatmul.mubr.bf16.gmra.mrb[0].mxu0 %v275
    %v419 = vpop.f32.mrb[0].mxu0
    %v420 = vadd.f32 %v69, %v419
    %v421 = vpop.f32.mrb[0].mxu0
    %v422 = vadd.f32 %v73, %v421
    %v423 = vpop.f32.mrb[0].mxu0
    %v424 = vadd.f32 %v69, %v423
    %v425 = vpop.f32.mrb[0].mxu0
    %v426 = vadd.f32 %v73, %v425
    %427 = vmatprep.mubr.bf16.mxu0 0
    %428 = vmatmul.mubr.bf16.gmra.mrb[0].mxu0 %v278
    %v429 = vpop.f32.mrb[0].mxu0
    %v430 = vadd.f32 %v69, %v429
    %v431 = vpop.f32.mrb[0].mxu0
    %v432 = vadd.f32 %v73, %v431
    %v433 = vpop.f32.mrb[0].mxu0
    %v434 = vadd.f32 %v69, %v433
    %v435 = vpop.f32.mrb[0].mxu0
    %v436 = vadd.f32 %v73, %v435
    %437 = vmatprep.mubr.bf16.mxu0 0
    %438 = vmatmul.mubr.bf16.gmra.mrb[0].mxu0 %v281
    %v439 = vpop.f32.mrb[0].mxu0
    %v440 = vadd.f32 %v69, %v439
    %v441 = vpop.f32.mrb[0].mxu0
    %v442 = vadd.f32 %v73, %v441
    %v443 = vpop.f32.mrb[0].mxu0
    %v444 = vadd.f32 %v69, %v443
    %v445 = vpop.f32.mrb[0].mxu0
    %v446 = vadd.f32 %v73, %v445
    %447 = vmatprep.mubr.bf16.mxu0 0
    %448 = vmatmul.mubr.bf16.gmra.mrb[0].mxu0 %v284
    %v449 = vpop.f32.mrb[0].mxu0
    %v450 = vadd.f32 %v69, %v449
    %v451 = vpop.f32.mrb[0].mxu0
    %v452 = vadd.f32 %v73, %v451
    %v453 = vpop.f32.mrb[0].mxu0
    %v454 = vadd.f32 %v69, %v453
    %v455 = vpop.f32.mrb[0].mxu0
    %v456 = vadd.f32 %v73, %v455
    %457 = vmatprep.mubr.bf16.mxu0 0
    %458 = vmatmul.mubr.bf16.gmra.mrb[0].mxu0 %v287
    %v459 = vpop.f32.mrb[0].mxu0
    %v460 = vadd.f32 %v69, %v459
    %v461 = vpop.f32.mrb[0].mxu0
    %v462 = vadd.f32 %v73, %v461
    %v463 = vpop.f32.mrb[0].mxu0
    %v464 = vadd.f32 %v69, %v463
    %v465 = vpop.f32.mrb[0].mxu0
    %v466 = vadd.f32 %v73, %v465
    %467 = vmatprep.mubr.bf16.mxu0 0
    %468 = vmatmul.mubr.bf16.gmra.mrb[0].mxu0 %v290
    %v469 = vpop.f32.mrb[0].mxu0
    %v470 = vadd.f32 %v69, %v469
    %v471 = vpop.f32.mrb[0].mxu0
    %v472 = vadd.f32 %v73, %v471
    %v473 = vpop.f32.mrb[0].mxu0
    %v474 = vadd.f32 %v69, %v473
    %v475 = vpop.f32.mrb[0].mxu0
    %v476 = vadd.f32 %v73, %v475
    %477 = vmatprep.mubr.bf16.mxu0 0
    %478 = vmatmul.mubr.bf16.gmra.mrb[0].mxu0 %v293
    %v479 = vpop.f32.mrb[0].mxu0
    %v480 = vadd.f32 %v69, %v479
    %v481 = vpop.f32.mrb[0].mxu0
    %v482 = vadd.f32 %v73, %v481
    %v483 = vpop.f32.mrb[0].mxu0
    %v484 = vadd.f32 %v69, %v483
    %v485 = vpop.f32.mrb[0].mxu0
    %v486 = vadd.f32 %v73, %v485
    %487 = vdwg.mxu0
    %488 = vmatprep.subr.bf16.mxu0 %v217
    %489 = vmatpush1.bf16.msra.mxu0 %v216
    %490 = vmatprep.subr.bf16.mxu0 %v221
    %491 = vmatpush1.bf16.msra.mxu0 %v220
    %492 = vmatprep.subr.bf16.mxu0 %v225
    %493 = vmatpush1.bf16.msra.mxu0 %v224
    %494 = vmatprep.subr.bf16.mxu0 %v229
    %495 = vmatpush1.bf16.msra.mxu0 %v228
    %496 = vmatprep.subr.bf16.mxu0 0
    %497 = vmatpush1.bf16.msra.mxu0 0
    %498 = vmatprep.subr.bf16.mxu0 0
    %499 = vmatpush1.bf16.msra.mxu0 0
    %500 = vmatprep.subr.bf16.mxu0 0
    %501 = vmatpush1.bf16.msra.mxu0 0
    %502 = vmatprep.subr.bf16.mxu0 0
    %503 = vmatpush1.bf16.msra.mxu0 0
    %504 = vmatprep.subr.bf16.mxu0 0
    %505 = vmatpush1.bf16.msra.mxu0 0
    %506 = vmatprep.subr.bf16.mxu0 0
    %507 = vmatpush1.bf16.msra.mxu0 0
    %508 = vmatprep.subr.bf16.mxu0 0
    %509 = vmatpush1.bf16.msra.mxu0 0
    %510 = vmatprep.subr.bf16.mxu0 0
    %511 = vmatpush1.bf16.msra.mxu0 0
    %512 = vmatprep.subr.bf16.mxu0 0
    %513 = vmatpush1.bf16.msra.mxu0 0
    %514 = vmatprep.subr.bf16.mxu0 0
    %515 = vmatpush1.bf16.msra.mxu0 0
    %516 = vmatprep.subr.bf16.mxu0 0
    %517 = vmatpush1.bf16.msra.mxu0 0
    %518 = vmatprep.subr.bf16.mxu0 0
    %519 = vmatpush1.bf16.msra.mxu0 0
    %520 = vmatprep.mubr.bf16.mxu0 0
    %521 = vmatmul.mubr.bf16.gmra.mrb[0].mxu0 %v248
    %v522 = vpop.f32.mrb[0].mxu0
    %v523 = vadd.f32 %v77, %v522
    %v524 = vpop.f32.mrb[0].mxu0
    %v525 = vadd.f32 %v81, %v524
    %v526 = vpop.f32.mrb[0].mxu0
    %v527 = vadd.f32 %v77, %v526
    %v528 = vpop.f32.mrb[0].mxu0
    %v529 = vadd.f32 %v81, %v528
    %530 = vmatprep.mubr.bf16.mxu0 0
    %531 = vmatmul.mubr.bf16.gmra.mrb[0].mxu0 %v251
    %v532 = vpop.f32.mrb[0].mxu0
    %v533 = vadd.f32 %v77, %v532
    %v534 = vpop.f32.mrb[0].mxu0
    %v535 = vadd.f32 %v81, %v534
    %v536 = vpop.f32.mrb[0].mxu0
    %v537 = vadd.f32 %v77, %v536
    %v538 = vpop.f32.mrb[0].mxu0
    %v539 = vadd.f32 %v81, %v538
    %540 = vmatprep.mubr.bf16.mxu0 0
    %541 = vmatmul.mubr.bf16.gmra.mrb[0].mxu0 %v254
    %v542 = vpop.f32.mrb[0].mxu0
    %v543 = vadd.f32 %v77, %v542
    %v544 = vpop.f32.mrb[0].mxu0
    %v545 = vadd.f32 %v81, %v544
    %v546 = vpop.f32.mrb[0].mxu0
    %v547 = vadd.f32 %v77, %v546
    %v548 = vpop.f32.mrb[0].mxu0
    %v549 = vadd.f32 %v81, %v548
    %550 = vmatprep.mubr.bf16.mxu0 0
    %551 = vmatmul.mubr.bf16.gmra.mrb[0].mxu0 %v257
    %v552 = vpop.f32.mrb[0].mxu0
    %v553 = vadd.f32 %v77, %v552
    %v554 = vpop.f32.mrb[0].mxu0
    %v555 = vadd.f32 %v81, %v554
    %v556 = vpop.f32.mrb[0].mxu0
    %v557 = vadd.f32 %v77, %v556
    %v558 = vpop.f32.mrb[0].mxu0
    %v559 = vadd.f32 %v81, %v558
    %560 = vmatprep.mubr.bf16.mxu0 0
    %561 = vmatmul.mubr.bf16.gmra.mrb[0].mxu0 %v260
    %v562 = vpop.f32.mrb[0].mxu0
    %v563 = vadd.f32 %v77, %v562
    %v564 = vpop.f32.mrb[0].mxu0
    %v565 = vadd.f32 %v81, %v564
    %v566 = vpop.f32.mrb[0].mxu0
    %v567 = vadd.f32 %v77, %v566
    %v568 = vpop.f32.mrb[0].mxu0
    %v569 = vadd.f32 %v81, %v568
    %570 = vmatprep.mubr.bf16.mxu0 0
    %571 = vmatmul.mubr.bf16.gmra.mrb[0].mxu0 %v263
    %v572 = vpop.f32.mrb[0].mxu0
    %v573 = vadd.f32 %v77, %v572
    %v574 = vpop.f32.mrb[0].mxu0
    %v575 = vadd.f32 %v81, %v574
    %v576 = vpop.f32.mrb[0].mxu0
    %v577 = vadd.f32 %v77, %v576
    %v578 = vpop.f32.mrb[0].mxu0
    %v579 = vadd.f32 %v81, %v578
    %580 = vmatprep.mubr.bf16.mxu0 0
    %581 = vmatmul.mubr.bf16.gmra.mrb[0].mxu0 %v266
    %v582 = vpop.f32.mrb[0].mxu0
    %v583 = vadd.f32 %v77, %v582
    %v584 = vpop.f32.mrb[0].mxu0
    %v585 = vadd.f32 %v81, %v584
    %v586 = vpop.f32.mrb[0].mxu0
    %v587 = vadd.f32 %v77, %v586
    %v588 = vpop.f32.mrb[0].mxu0
    %v589 = vadd.f32 %v81, %v588
    %590 = vmatprep.mubr.bf16.mxu0 0
    %591 = vmatmul.mubr.bf16.gmra.mrb[0].mxu0 %v269
    %v592 = vpop.f32.mrb[0].mxu0
    %v593 = vadd.f32 %v77, %v592
    %v594 = vpop.f32.mrb[0].mxu0
    %v595 = vadd.f32 %v81, %v594
    %v596 = vpop.f32.mrb[0].mxu0
    %v597 = vadd.f32 %v77, %v596
    %v598 = vpop.f32.mrb[0].mxu0
    %v599 = vadd.f32 %v81, %v598
    %600 = vmatprep.mubr.bf16.mxu0 0
    %601 = vmatmul.mubr.bf16.gmra.mrb[0].mxu0 %v272
    %v602 = vpop.f32.mrb[0].mxu0
    %v603 = vadd.f32 %v77, %v602
    %v604 = vpop.f32.mrb[0].mxu0
    %v605 = vadd.f32 %v81, %v604
    %v606 = vpop.f32.mrb[0].mxu0
    %v607 = vadd.f32 %v77, %v606
    %v608 = vpop.f32.mrb[0].mxu0
    %v609 = vadd.f32 %v81, %v608
    %610 = vmatprep.mubr.bf16.mxu0 0
    %611 = vmatmul.mubr.bf16.gmra.mrb[0].mxu0 %v275
    %v612 = vpop.f32.mrb[0].mxu0
    %v613 = vadd.f32 %v77, %v612
    %v614 = vpop.f32.mrb[0].mxu0
    %v615 = vadd.f32 %v81, %v614
    %v616 = vpop.f32.mrb[0].mxu0
    %v617 = vadd.f32 %v77, %v616
    %v618 = vpop.f32.mrb[0].mxu0
    %v619 = vadd.f32 %v81, %v618
    %620 = vmatprep.mubr.bf16.mxu0 0
    %621 = vmatmul.mubr.bf16.gmra.mrb[0].mxu0 %v278
    %v622 = vpop.f32.mrb[0].mxu0
    %v623 = vadd.f32 %v77, %v622
    %v624 = vpop.f32.mrb[0].mxu0
    %v625 = vadd.f32 %v81, %v624
    %v626 = vpop.f32.mrb[0].mxu0
    %v627 = vadd.f32 %v77, %v626
    %v628 = vpop.f32.mrb[0].mxu0
    %v629 = vadd.f32 %v81, %v628
    %630 = vmatprep.mubr.bf16.mxu0 0
    %631 = vmatmul.mubr.bf16.gmra.mrb[0].mxu0 %v281
    %v632 = vpop.f32.mrb[0].mxu0
    %v633 = vadd.f32 %v77, %v632
    %v634 = vpop.f32.mrb[0].mxu0
    %v635 = vadd.f32 %v81, %v634
    %v636 = vpop.f32.mrb[0].mxu0
    %v637 = vadd.f32 %v77, %v636
    %v638 = vpop.f32.mrb[0].mxu0
    %v639 = vadd.f32 %v81, %v638
    %640 = vmatprep.mubr.bf16.mxu0 0
    %641 = vmatmul.mubr.bf16.gmra.mrb[0].mxu0 %v284
    %v642 = vpop.f32.mrb[0].mxu0
    %v643 = vadd.f32 %v77, %v642
    %v644 = vpop.f32.mrb[0].mxu0
    %v645 = vadd.f32 %v81, %v644
    %v646 = vpop.f32.mrb[0].mxu0
    %v647 = vadd.f32 %v77, %v646
    %v648 = vpop.f32.mrb[0].mxu0
    %v649 = vadd.f32 %v81, %v648
    %650 = vmatprep.mubr.bf16.mxu0 0
    %651 = vmatmul.mubr.bf16.gmra.mrb[0].mxu0 %v287
    %v652 = vpop.f32.mrb[0].mxu0
    %v653 = vadd.f32 %v77, %v652
    %v654 = vpop.f32.mrb[0].mxu0
    %v655 = vadd.f32 %v81, %v654
    %v656 = vpop.f32.mrb[0].mxu0
    %v657 = vadd.f32 %v77, %v656
    %v658 = vpop.f32.mrb[0].mxu0
    %v659 = vadd.f32 %v81, %v658
    %660 = vmatprep.mubr.bf16.mxu0 0
    %661 = vmatmul.mubr.bf16.gmra.mrb[0].mxu0 %v290
    %v662 = vpop.f32.mrb[0].mxu0
    %v663 = vadd.f32 %v77, %v662
    %v664 = vpop.f32.mrb[0].mxu0
    %v665 = vadd.f32 %v81, %v664
    %v666 = vpop.f32.mrb[0].mxu0
    %v667 = vadd.f32 %v77, %v666
    %v668 = vpop.f32.mrb[0].mxu0
    %v669 = vadd.f32 %v81, %v668
    %670 = vmatprep.mubr.bf16.mxu0 0
    %671 = vmatmul.mubr.bf16.gmra.mrb[0].mxu0 %v293
    %v672 = vpop.f32.mrb[0].mxu0
    %v673 = vadd.f32 %v77, %v672
    %v674 = vpop.f32.mrb[0].mxu0
    %v675 = vadd.f32 %v81, %v674
    %v676 = vpop.f32.mrb[0].mxu0
    %v677 = vadd.f32 %v77, %v676
    %v678 = vpop.f32.mrb[0].mxu0
    %v679 = vadd.f32 %v81, %v678
    %680 = vdwg.mxu0
    %v681 = vpack.c.bf16 %v334, %v330
    %v682 = vpack.c.bf16 %v336, %v332
    %v683 = vpack.c.bf16 %v527, %v523
    %v684 = vpack.c.bf16 %v529, %v525
    %v685 = vpack.c.bf16 %v344, %v340
    %v686 = vpack.c.bf16 %v346, %v342
    %v687 = vpack.c.bf16 %v537, %v533
    %v688 = vpack.c.bf16 %v539, %v535
    %v689 = vpack.c.bf16 %v354, %v350
    %v690 = vpack.c.bf16 %v356, %v352
    %v691 = vpack.c.bf16 %v547, %v543
    %v692 = vpack.c.bf16 %v549, %v545
    %v693 = vpack.c.bf16 %v364, %v360
    %v694 = vpack.c.bf16 %v366, %v362
    %v695 = vpack.c.bf16 %v557, %v553
    %v696 = vpack.c.bf16 %v559, %v555
    %v697 = vpack.c.bf16 %v374, %v370
    %v698 = vpack.c.bf16 %v376, %v372
    %v699 = vpack.c.bf16 %v567, %v563
    %v700 = vpack.c.bf16 %v569, %v565
    %v701 = vpack.c.bf16 %v384, %v380
    %v702 = vpack.c.bf16 %v386, %v382
    %v703 = vpack.c.bf16 %v577, %v573
    %v704 = vpack.c.bf16 %v579, %v575
    %v705 = vpack.c.bf16 %v394, %v390
    %v706 = vpack.c.bf16 %v396, %v392
    %v707 = vpack.c.bf16 %v587, %v583
    %v708 = vpack.c.bf16 %v589, %v585
    %v709 = vpack.c.bf16 %v404, %v400
    %v710 = vpack.c.bf16 %v406, %v402
    %v711 = vpack.c.bf16 %v597, %v593
    %v712 = vpack.c.bf16 %v599, %v595
    %v713 = vpack.c.bf16 %v414, %v410
    %v714 = vpack.c.bf16 %v416, %v412
    %v715 = vpack.c.bf16 %v607, %v603
    %v716 = vpack.c.bf16 %v609, %v605
    %v717 = vpack.c.bf16 %v424, %v420
    %v718 = vpack.c.bf16 %v426, %v422
    %v719 = vpack.c.bf16 %v617, %v613
    %v720 = vpack.c.bf16 %v619, %v615
    %v721 = vpack.c.bf16 %v434, %v430
    %v722 = vpack.c.bf16 %v436, %v432
    %v723 = vpack.c.bf16 %v627, %v623
    %v724 = vpack.c.bf16 %v629, %v625
    %v725 = vpack.c.bf16 %v444, %v440
    %v726 = vpack.c.bf16 %v446, %v442
    %v727 = vpack.c.bf16 %v637, %v633
    %v728 = vpack.c.bf16 %v639, %v635
    %v729 = vpack.c.bf16 %v454, %v450
    %v730 = vpack.c.bf16 %v456, %v452
    %v731 = vpack.c.bf16 %v647, %v643
    %v732 = vpack.c.bf16 %v649, %v645
    %v733 = vpack.c.bf16 %v464, %v460
    %v734 = vpack.c.bf16 %v466, %v462
    %v735 = vpack.c.bf16 %v657, %v653
    %v736 = vpack.c.bf16 %v659, %v655
    %v737 = vpack.c.bf16 %v474, %v470
    %v738 = vpack.c.bf16 %v476, %v472
    %v739 = vpack.c.bf16 %v667, %v663
    %v740 = vpack.c.bf16 %v669, %v665
    %v741 = vpack.c.bf16 %v484, %v480
    %v742 = vpack.c.bf16 %v486, %v482
    %v743 = vpack.c.bf16 %v677, %v673
    %v744 = vpack.c.bf16 %v679, %v675
    %v809 = vunpack.c.l.b16 %v681
    %v810 = vunpack.c.l.b16 %v682
    %v811 = vunpack.c.l.b16 %v683
    %v812 = vunpack.c.l.b16 %v684
    %v813 = vunpack.c.h.b16 %v681
    %v814 = vunpack.c.h.b16 %v682
    %v815 = vunpack.c.h.b16 %v683
    %v816 = vunpack.c.h.b16 %v684
    %v817 = vunpack.c.l.b16 %v685
    %v818 = vunpack.c.l.b16 %v686
    %v819 = vunpack.c.l.b16 %v687
    %v820 = vunpack.c.l.b16 %v688
    %v821 = vunpack.c.h.b16 %v685
    %v822 = vunpack.c.h.b16 %v686
    %v823 = vunpack.c.h.b16 %v687
    %v824 = vunpack.c.h.b16 %v688
    %v825 = vunpack.c.l.b16 %v689
    %v826 = vunpack.c.l.b16 %v690
    %v827 = vunpack.c.l.b16 %v691
    %v828 = vunpack.c.l.b16 %v692
    %v829 = vunpack.c.h.b16 %v689
    %v830 = vunpack.c.h.b16 %v690
    %v831 = vunpack.c.h.b16 %v691
    %v832 = vunpack.c.h.b16 %v692
    %v833 = vunpack.c.l.b16 %v693
    %v834 = vunpack.c.l.b16 %v694
    %v835 = vunpack.c.l.b16 %v695
    %v836 = vunpack.c.l.b16 %v696
    %v837 = vunpack.c.h.b16 %v693
    %v838 = vunpack.c.h.b16 %v694
    %v839 = vunpack.c.h.b16 %v695
    %v840 = vunpack.c.h.b16 %v696
    %v841 = vunpack.c.l.b16 %v697
    %v842 = vunpack.c.l.b16 %v698
    %v843 = vunpack.c.l.b16 %v699
    %v844 = vunpack.c.l.b16 %v700
    %v845 = vunpack.c.h.b16 %v697
    %v846 = vunpack.c.h.b16 %v698
    %v847 = vunpack.c.h.b16 %v699
    %v848 = vunpack.c.h.b16 %v700
    %v849 = vunpack.c.l.b16 %v701
    %v850 = vunpack.c.l.b16 %v702
    %v851 = vunpack.c.l.b16 %v703
    %v852 = vunpack.c.l.b16 %v704
    %v853 = vunpack.c.h.b16 %v701
    %v854 = vunpack.c.h.b16 %v702
    %v855 = vunpack.c.h.b16 %v703
    %v856 = vunpack.c.h.b16 %v704
    %v857 = vunpack.c.l.b16 %v705
    %v858 = vunpack.c.l.b16 %v706
    %v859 = vunpack.c.l.b16 %v707
    %v860 = vunpack.c.l.b16 %v708
    %v861 = vunpack.c.h.b16 %v705
    %v862 = vunpack.c.h.b16 %v706
    %v863 = vunpack.c.h.b16 %v707
    %v864 = vunpack.c.h.b16 %v708
    %v865 = vunpack.c.l.b16 %v709
    %v866 = vunpack.c.l.b16 %v710
    %v867 = vunpack.c.l.b16 %v711
    %v868 = vunpack.c.l.b16 %v712
    %v869 = vunpack.c.h.b16 %v709
    %v870 = vunpack.c.h.b16 %v710
    %v871 = vunpack.c.h.b16 %v711
    %v872 = vunpack.c.h.b16 %v712
    %v873 = vunpack.c.l.b16 %v713
    %v874 = vunpack.c.l.b16 %v714
    %v875 = vunpack.c.l.b16 %v715
    %v876 = vunpack.c.l.b16 %v716
    %v877 = vunpack.c.h.b16 %v713
    %v878 = vunpack.c.h.b16 %v714
    %v879 = vunpack.c.h.b16 %v715
    %v880 = vunpack.c.h.b16 %v716
    %v881 = vunpack.c.l.b16 %v717
    %v882 = vunpack.c.l.b16 %v718
    %v883 = vunpack.c.l.b16 %v719
    %v884 = vunpack.c.l.b16 %v720
    %v885 = vunpack.c.h.b16 %v717
    %v886 = vunpack.c.h.b16 %v718
    %v887 = vunpack.c.h.b16 %v719
    %v888 = vunpack.c.h.b16 %v720
    %v889 = vunpack.c.l.b16 %v721
    %v890 = vunpack.c.l.b16 %v722
    %v891 = vunpack.c.l.b16 %v723
    %v892 = vunpack.c.l.b16 %v724
    %v893 = vunpack.c.h.b16 %v721
    %v894 = vunpack.c.h.b16 %v722
    %v895 = vunpack.c.h.b16 %v723
    %v896 = vunpack.c.h.b16 %v724
    %v897 = vunpack.c.l.b16 %v725
    %v898 = vunpack.c.l.b16 %v726
    %v899 = vunpack.c.l.b16 %v727
    %v900 = vunpack.c.l.b16 %v728
    %v901 = vunpack.c.h.b16 %v725
    %v902 = vunpack.c.h.b16 %v726
    %v903 = vunpack.c.h.b16 %v727
    %v904 = vunpack.c.h.b16 %v728
    %v905 = vunpack.c.l.b16 %v729
    %v906 = vunpack.c.l.b16 %v730
    %v907 = vunpack.c.l.b16 %v731
    %v908 = vunpack.c.l.b16 %v732
    %v909 = vunpack.c.h.b16 %v729
    %v910 = vunpack.c.h.b16 %v730
    %v911 = vunpack.c.h.b16 %v731
    %v912 = vunpack.c.h.b16 %v732
    %v913 = vunpack.c.l.b16 %v733
    %v914 = vunpack.c.l.b16 %v734
    %v915 = vunpack.c.l.b16 %v735
    %v916 = vunpack.c.l.b16 %v736
    %v917 = vunpack.c.h.b16 %v733
    %v918 = vunpack.c.h.b16 %v734
    %v919 = vunpack.c.h.b16 %v735
    %v920 = vunpack.c.h.b16 %v736
    %v921 = vunpack.c.l.b16 %v737
    %v922 = vunpack.c.l.b16 %v738
    %v923 = vunpack.c.l.b16 %v739
    %v924 = vunpack.c.l.b16 %v740
    %v925 = vunpack.c.h.b16 %v737
    %v926 = vunpack.c.h.b16 %v738
    %v927 = vunpack.c.h.b16 %v739
    %v928 = vunpack.c.h.b16 %v740
    %v929 = vunpack.c.l.b16 %v741
    %v930 = vunpack.c.l.b16 %v742
    %v931 = vunpack.c.l.b16 %v743
    %v932 = vunpack.c.l.b16 %v744
    %v933 = vunpack.c.h.b16 %v741
    %v934 = vunpack.c.h.b16 %v742
    %v935 = vunpack.c.h.b16 %v743
    %v936 = vunpack.c.h.b16 %v744
    %v937 = vpack.c.b16 %v810, %v809
    %v938 = vpack.c.b16 %v812, %v811
    %v939 = vpack.c.b16 %v814, %v813
    %v940 = vpack.c.b16 %v816, %v815
    %v941 = vpack.c.b16 %v818, %v817
    %v942 = vpack.c.b16 %v820, %v819
    %v943 = vpack.c.b16 %v822, %v821
    %v944 = vpack.c.b16 %v824, %v823
    %v945 = vpack.c.b16 %v826, %v825
    %v946 = vpack.c.b16 %v828, %v827
    %v947 = vpack.c.b16 %v830, %v829
    %v948 = vpack.c.b16 %v832, %v831
    %v949 = vpack.c.b16 %v834, %v833
    %v950 = vpack.c.b16 %v836, %v835
    %v951 = vpack.c.b16 %v838, %v837
    %v952 = vpack.c.b16 %v840, %v839
    %v953 = vpack.c.b16 %v842, %v841
    %v954 = vpack.c.b16 %v844, %v843
    %v955 = vpack.c.b16 %v846, %v845
    %v956 = vpack.c.b16 %v848, %v847
    %v957 = vpack.c.b16 %v850, %v849
    %v958 = vpack.c.b16 %v852, %v851
    %v959 = vpack.c.b16 %v854, %v853
    %v960 = vpack.c.b16 %v856, %v855
    %v961 = vpack.c.b16 %v858, %v857
    %v962 = vpack.c.b16 %v860, %v859
    %v963 = vpack.c.b16 %v862, %v861
    %v964 = vpack.c.b16 %v864, %v863
    %v965 = vpack.c.b16 %v866, %v865
    %v966 = vpack.c.b16 %v868, %v867
    %v967 = vpack.c.b16 %v870, %v869
    %v968 = vpack.c.b16 %v872, %v871
    %v969 = vpack.c.b16 %v874, %v873
    %v970 = vpack.c.b16 %v876, %v875
    %v971 = vpack.c.b16 %v878, %v877
    %v972 = vpack.c.b16 %v880, %v879
    %v973 = vpack.c.b16 %v882, %v881
    %v974 = vpack.c.b16 %v884, %v883
    %v975 = vpack.c.b16 %v886, %v885
    %v976 = vpack.c.b16 %v888, %v887
    %v977 = vpack.c.b16 %v890, %v889
    %v978 = vpack.c.b16 %v892, %v891
    %v979 = vpack.c.b16 %v894, %v893
    %v980 = vpack.c.b16 %v896, %v895
    %v981 = vpack.c.b16 %v898, %v897
    %v982 = vpack.c.b16 %v900, %v899
    %v983 = vpack.c.b16 %v902, %v901
    %v984 = vpack.c.b16 %v904, %v903
    %v985 = vpack.c.b16 %v906, %v905
    %v986 = vpack.c.b16 %v908, %v907
    %v987 = vpack.c.b16 %v910, %v909
    %v988 = vpack.c.b16 %v912, %v911
    %v989 = vpack.c.b16 %v914, %v913
    %v990 = vpack.c.b16 %v916, %v915
    %v991 = vpack.c.b16 %v918, %v917
    %v992 = vpack.c.b16 %v920, %v919
    %v993 = vpack.c.b16 %v922, %v921
    %v994 = vpack.c.b16 %v924, %v923
    %v995 = vpack.c.b16 %v926, %v925
    %v996 = vpack.c.b16 %v928, %v927
    %v997 = vpack.c.b16 %v930, %v929
    %v998 = vpack.c.b16 %v932, %v931
    %v999 = vpack.c.b16 %v934, %v933
    %v1000 = vpack.c.b16 %v936, %v935
    %1065 = vst [vmem:[#allocation2] sm:$0xff] %v937
    %1066 = vst [vmem:[#allocation2 + $0x8] sm:$0xff] %v938
    %1067 = vst [vmem:[#allocation2 + $0x10] sm:$0xff] %v939
    %1068 = vst [vmem:[#allocation2 + $0x18] sm:$0xff] %v940
    %1069 = vst [vmem:[#allocation2 + $0x20] sm:$0xff] %v941
    %1070 = vst [vmem:[#allocation2 + $0x28] sm:$0xff] %v942
    %1071 = vst [vmem:[#allocation2 + $0x30] sm:$0xff] %v943
    %1072 = vst [vmem:[#allocation2 + $0x38] sm:$0xff] %v944
    %1073 = vst [vmem:[#allocation2 + $0x40] sm:$0xff] %v945
    %1074 = vst [vmem:[#allocation2 + $0x48] sm:$0xff] %v946
    %1075 = vst [vmem:[#allocation2 + $0x50] sm:$0xff] %v947
    %1076 = vst [vmem:[#allocation2 + $0x58] sm:$0xff] %v948
    %1077 = vst [vmem:[#allocation2 + $0x60] sm:$0xff] %v949
    %1078 = vst [vmem:[#allocation2 + $0x68] sm:$0xff] %v950
    %1079 = vst [vmem:[#allocation2 + $0x70] sm:$0xff] %v951
    %1080 = vst [vmem:[#allocation2 + $0x78] sm:$0xff] %v952
    %1081 = vst [vmem:[#allocation2 + $0x80] sm:$0xff] %v953
    %1082 = vst [vmem:[#allocation2 + $0x88] sm:$0xff] %v954
    %1083 = vst [vmem:[#allocation2 + $0x90] sm:$0xff] %v955
    %1084 = vst [vmem:[#allocation2 + $0x98] sm:$0xff] %v956
    %1085 = vst [vmem:[#allocation2 + $0xa0] sm:$0xff] %v957
    %1086 = vst [vmem:[#allocation2 + $0xa8] sm:$0xff] %v958
    %1087 = vst [vmem:[#allocation2 + $0xb0] sm:$0xff] %v959
    %1088 = vst [vmem:[#allocation2 + $0xb8] sm:$0xff] %v960
    %1089 = vst [vmem:[#allocation2 + $0xc0] sm:$0xff] %v961
    %1090 = vst [vmem:[#allocation2 + $0xc8] sm:$0xff] %v962
    %1091 = vst [vmem:[#allocation2 + $0xd0] sm:$0xff] %v963
    %1092 = vst [vmem:[#allocation2 + $0xd8] sm:$0xff] %v964
    %1093 = vst [vmem:[#allocation2 + $0xe0] sm:$0xff] %v965
    %1094 = vst [vmem:[#allocation2 + $0xe8] sm:$0xff] %v966
    %1095 = vst [vmem:[#allocation2 + $0xf0] sm:$0xff] %v967
    %1096 = vst [vmem:[#allocation2 + $0xf8] sm:$0xff] %v968
    %1097 = vst [vmem:[#allocation2 + $0x100] sm:$0xff] %v969
    %1098 = vst [vmem:[#allocation2 + $0x108] sm:$0xff] %v970
    %1099 = vst [vmem:[#allocation2 + $0x110] sm:$0xff] %v971
    %1100 = vst [vmem:[#allocation2 + $0x118] sm:$0xff] %v972
    %1101 = vst [vmem:[#allocation2 + $0x120] sm:$0xff] %v973
    %1102 = vst [vmem:[#allocation2 + $0x128] sm:$0xff] %v974
    %1103 = vst [vmem:[#allocation2 + $0x130] sm:$0xff] %v975
    %1104 = vst [vmem:[#allocation2 + $0x138] sm:$0xff] %v976
    %1105 = vst [vmem:[#allocation2 + $0x140] sm:$0xff] %v977
    %1106 = vst [vmem:[#allocation2 + $0x148] sm:$0xff] %v978
    %1107 = vst [vmem:[#allocation2 + $0x150] sm:$0xff] %v979
    %1108 = vst [vmem:[#allocation2 + $0x158] sm:$0xff] %v980
    %1109 = vst [vmem:[#allocation2 + $0x160] sm:$0xff] %v981
    %1110 = vst [vmem:[#allocation2 + $0x168] sm:$0xff] %v982
    %1111 = vst [vmem:[#allocation2 + $0x170] sm:$0xff] %v983
    %1112 = vst [vmem:[#allocation2 + $0x178] sm:$0xff] %v984
    %1113 = vst [vmem:[#allocation2 + $0x180] sm:$0xff] %v985
    %1114 = vst [vmem:[#allocation2 + $0x188] sm:$0xff] %v986
    %1115 = vst [vmem:[#allocation2 + $0x190] sm:$0xff] %v987
    %1116 = vst [vmem:[#allocation2 + $0x198] sm:$0xff] %v988
    %1117 = vst [vmem:[#allocation2 + $0x1a0] sm:$0xff] %v989
    %1118 = vst [vmem:[#allocation2 + $0x1a8] sm:$0xff] %v990
    %1119 = vst [vmem:[#allocation2 + $0x1b0] sm:$0xff] %v991
    %1120 = vst [vmem:[#allocation2 + $0x1b8] sm:$0xff] %v992
    %1121 = vst [vmem:[#allocation2 + $0x1c0] sm:$0xff] %v993
    %1122 = vst [vmem:[#allocation2 + $0x1c8] sm:$0xff] %v994
    %1123 = vst [vmem:[#allocation2 + $0x1d0] sm:$0xff] %v995
    %1124 = vst [vmem:[#allocation2 + $0x1d8] sm:$0xff] %v996
    %1125 = vst [vmem:[#allocation2 + $0x1e0] sm:$0xff] %v997
    %1126 = vst [vmem:[#allocation2 + $0x1e8] sm:$0xff] %v998
    %1127 = vst [vmem:[#allocation2 + $0x1f0] sm:$0xff] %v999
    %1128 = vst [vmem:[#allocation2 + $0x1f8] sm:$0xff] %v1000
    // Predicated region
    $region14: #{tpu_custom_call.1} parent=1 // pred_check
      _
    $region15: #{tpu_custom_call.1} parent=1 // pred_check_branch
      %1130 = sbr.rel (0) target = $region17
    $region16: #{tpu_custom_call.1} parent=1 // pred_region
      %s1132 = ssub.s32 8192, 8192
      %1133 = vsyncadd [#allocation3], %s1132
      %s1134 = sshll.u32 [#allocation2], 4
      %s1135 = int_to_ptr.vmem [resolvable:$true] %s1134
      %1140 = dma.vmem_to_hbm [thread:$0]  %s1135, 8192, %s3, [#allocation3], 256, 256, 16
    $region17: #{tpu_custom_call.1} parent=1 // pred_fallthru
      _
    // Predicated region
    $region18: #{tpu_custom_call.1} parent=1 // pred_check
      _
    $region19: #{tpu_custom_call.1} parent=1 // pred_check_branch
      %1142 = sbr.rel (0) target = $region21
    $region20: #{tpu_custom_call.1} parent=1 // pred_region
      %1143 = dma.done [#allocation3], 8192
    $region21: #{tpu_custom_call.1} parent=1 // pred_fallthru
      _
    %1144 = vsyncpa [#allocation3], 1

</llo_original>
